<compile_context>
chip_gen: v7x
topology: tpu7x:2x2x1
jax: 0.10.0
libtpu: 0.0.40
codegen_flags: <defaults>
</compile_context>

<pallas_src>
import jax
import jax.numpy as jnp
from jax.experimental import pallas as pl
from jax.experimental.pallas import tpu as pltpu


# -----------------------------------------------------------------------------
# Shared gate math: single-tanh sigmoid+tanh over the fused (B, 4H) preact.
# -----------------------------------------------------------------------------
def _apply_gates(preact, sig_mask):
    """sigmoid on masked lanes, tanh elsewhere, using one tanh pass."""
    t = jnp.tanh(jnp.where(sig_mask, 0.5 * preact, preact))
    return jnp.where(sig_mask, 0.5 * (t + 1.0), t)


# -----------------------------------------------------------------------------
# Single-step fused LSTM cell kernel (matches MYLSTMCellWithGateoutput.forward)
# -----------------------------------------------------------------------------
def _lstm_cell_kernel(xh_ref, c_ref, w_ref, b_ref, out_ref):
    """One fused matmul + masked gate nonlinearities + state update.

    xh_ref : (B, D+H)    concat([x, h], -1)
    c_ref  : (B, H)      previous cell state
    w_ref  : (D+H, 4H)   stacked [Wi; Wh] (pre-transposed so y = x @ W)
    b_ref  : (1, 4H)     folded bias (bi + bh)
    out_ref: (B, 4H)     packed [i_t, f_t, h_t, c_t]  (lane-dense slab)
    """
    H = c_ref.shape[-1]

    # Single MXU push: (B, D+H) @ (D+H, 4H) -> (B, 4H), f32 accumulate.
    preact = (jnp.dot(xh_ref[...], w_ref[...],
                      preferred_element_type=jnp.float32)
              + b_ref[...])

    # Module layout: lanes [0,3H) -> sigmoid (i, f, o); lanes [3H,4H) -> tanh (g).
    lane = jax.lax.broadcasted_iota(jnp.int32, preact.shape, 1)
    gates = _apply_gates(preact, lane < 3 * H)

    i_t = gates[:, 0 * H:1 * H]
    f_t = gates[:, 1 * H:2 * H]
    o_t = gates[:, 2 * H:3 * H]
    g_t = gates[:, 3 * H:4 * H]

    c_t = c_ref[...] * f_t + i_t * g_t
    h_t = o_t * jnp.tanh(c_t)

    # Pack [i, f, h, c]: gates[:, :2H] is already in lanes 0:2H -> no XLU shift.
    out_ref[...] = jnp.concatenate([gates[:, :2 * H], h_t, c_t], axis=-1)


def lstm_cell_forward(x, hidden, wi, bi, wh, bh):
    """Mirrors MYLSTMCellWithGateoutput.forward.

    Args:
      x:       (B, input_size) float32
      hidden:  nested tuple, hidden[1] = (hid, cell), each (1, B, H)
      wi, bi:  i2h weights (input_size, 4H) (pre-transposed) and bias (4H,)
      wh, bh:  h2h weights (hidden_size, 4H) (pre-transposed) and bias (4H,)

    Returns:
      (h_t, (h_t, c_t), f_t, i_t) with h_t, c_t shaped (1, B, H) and
      f_t, i_t shaped (B, H), matching the PyTorch module.
    """
    hid, cell = hidden[1]
    B, H = hid.shape[1], hid.shape[2]

    hid2d = hid.reshape(B, H).astype(jnp.float32)
    cell2d = cell.reshape(B, H).astype(jnp.float32)

    # Trace-time fusions (done once under jit, outside the kernel).
    # TODO(synk): on v7x (MRB accumulate) pass x/h separately and issue two
    #             accumulating dots instead of this wrapper-side concat.
    xh = jnp.concatenate([x.astype(jnp.float32), hid2d], axis=-1)       # (B, D+H)
    w = jnp.concatenate([wi.astype(jnp.float32),
                         wh.astype(jnp.float32)], axis=0)               # (D+H, 4H)
    bias = (bi + bh).reshape(1, 4 * H).astype(jnp.float32)              # (1, 4H)

    vmem = pl.BlockSpec(memory_space=pltpu.MemorySpace.VMEM)
    packed = pl.pallas_call(
        _lstm_cell_kernel,
        out_shape=jax.ShapeDtypeStruct((B, 4 * H), jnp.float32),
        in_specs=[vmem, vmem, vmem, vmem],
        out_specs=vmem,
    )(xh, cell2d, w, bias)

    # Packed slab order: [i, f, h, c]
    i_t = packed[:, 0 * H:1 * H]
    f_t = packed[:, 1 * H:2 * H]
    h_t = packed[:, 2 * H:3 * H]
    c_t = packed[:, 3 * H:4 * H]

    h_t3 = h_t.reshape(1, B, H)
    c_t3 = c_t.reshape(1, B, H)
    return (h_t3, (h_t3, c_t3), f_t, i_t)


# -----------------------------------------------------------------------------
# Sequence variant: whole timestep loop inside ONE kernel invocation (no grid).
# -----------------------------------------------------------------------------
def _lstm_seq_kernel(xs_ref, h0_ref, c0_ref, w_ref, b_ref, out_ref):
    """xs_ref: (T, B, D); h0/c0: (B, H); w: (D+H, 4H); b: (1, 4H);
    out_ref: (T, B, 4H) packed [i, f, h, c] per timestep."""
    T = xs_ref.shape[0]
    B, H = c0_ref.shape

    # Hoisted loop invariants (JAX does not CSE broadcast_in_dim / iota).
    w = w_ref[...]                                              # (D+H, 4H)
    bias = jnp.broadcast_to(b_ref[...], (B, 4 * H))             # (B, 4H)
    lane = jax.lax.broadcasted_iota(jnp.int32, (B, 4 * H), 1)
    sig_mask = lane < 3 * H

    def body(t, carry):
        h, c = carry
        x_t = xs_ref[t]                                         # (B, D)
        xh = jnp.concatenate([x_t, h], axis=-1)                 # (B, D+H), lane concat
        preact = jnp.dot(xh, w, preferred_element_type=jnp.float32) + bias
        gates = _apply_gates(preact, sig_mask)

        i_t = gates[:, 0 * H:1 * H]
        f_t = gates[:, 1 * H:2 * H]
        o_t = gates[:, 2 * H:3 * H]
        g_t = gates[:, 3 * H:4 * H]

        c_t = c * f_t + i_t * g_t
        h_t = o_t * jnp.tanh(c_t)

        # Lane-dense (B, 4H) per-step slab: [i, f, h, c]
        out_ref[t] = jnp.concatenate([gates[:, :2 * H], h_t, c_t], axis=-1)
        return (h_t, c_t)

    jax.lax.fori_loop(0, T, body, (h0_ref[...], c0_ref[...]), unroll=True)


def lstm_sequence_forward(xs, hidden, wi, bi, wh, bh):
    """Runs the cell over a whole sequence inside one kernel.

    Args:
      xs: (T, B, input_size);  hidden[1] = (hid, cell), each (1, B, H).
    Returns:
      (h_seq, c_seq, f_seq, i_seq), each (T, B, H).
    """
    hid, cell = hidden[1]
    T, B, D = xs.shape
    H = hid.shape[2]

    h0 = hid.reshape(B, H).astype(jnp.float32)
    c0 = cell.reshape(B, H).astype(jnp.float32)
    w = jnp.concatenate([wi.astype(jnp.float32),
                         wh.astype(jnp.float32)], axis=0)               # (D+H, 4H)
    bias = (bi + bh).reshape(1, 4 * H).astype(jnp.float32)              # (1, 4H)

    # Everything fits VMEM trivially (~40 KiB total at these shapes), so all
    # operands are whole-array VMEM-resident and there is no grid at all.
    # TODO(synk): for long T / large B, add a "parallel" batch grid axis
    #             (v7x dual-core) and tile T so xs/out stay within VMEM.
    vmem = pl.BlockSpec(memory_space=pltpu.MemorySpace.VMEM)
    packed = pl.pallas_call(
        _lstm_seq_kernel,
        out_shape=jax.ShapeDtypeStruct((T, B, 4 * H), jnp.float32),
        in_specs=[vmem, vmem, vmem, vmem, vmem],
        out_specs=vmem,
    )(xs.astype(jnp.float32), h0, c0, w, bias)

    # Packed slab order: [i, f, h, c]
    i_seq = packed[:, :, 0 * H:1 * H]
    f_seq = packed[:, :, 1 * H:2 * H]
    h_seq = packed[:, :, 2 * H:3 * H]
    c_seq = packed[:, :, 3 * H:4 * H]
    return h_seq, c_seq, f_seq, i_seq


# -----------------------------------------------------------------------------
# Pure-JAX references (encode the module's exact slicing: [i | f | o | g])
# -----------------------------------------------------------------------------
def _reference_step(x, h, c, wi, bi, wh, bh):
    H = h.shape[-1]
    preact = x @ wi + bi + h @ wh + bh
    gates = jax.nn.sigmoid(preact[:, :3 * H])
    g_t = jnp.tanh(preact[:, 3 * H:])
    i_t = gates[:, :H]
    f_t = gates[:, H:2 * H]
    o_t = gates[:, 2 * H:3 * H]
    c_t = c * f_t + i_t * g_t
    h_t = o_t * jnp.tanh(c_t)
    return h_t, c_t, f_t, i_t


def _reference_sequence(xs, h0, c0, wi, bi, wh, bh):
    def step(carry, x_t):
        h, c = carry
        h_t, c_t, f_t, i_t = _reference_step(x_t, h, c, wi, bi, wh, bh)
        return (h_t, c_t), (h_t, c_t, f_t, i_t)

    _, ys = jax.lax.scan(step, (h0, c0), xs)
    return ys  # tuple of (T, B, H)


# -----------------------------------------------------------------------------
if __name__ == "__main__":
    # Small shapes consistent with the module's forward:
    #   x: (batch, input_size); hid/cell: (1, batch, hidden_size)
    batch = 8
    input_size = 16
    hidden_size = 32      # 4 * hidden_size = 128 -> lane-dense gate/output axis
    seq_len = 8

    key = jax.random.PRNGKey(0)
    kx, kxs, kh, kc, kwi, kbi, kwh, kbh = jax.random.split(key, 8)

    x = jax.random.normal(kx, (batch, input_size), dtype=jnp.float32)
    xs = jax.random.normal(kxs, (seq_len, batch, input_size), dtype=jnp.float32)
    hid = jax.random.normal(kh, (1, batch, hidden_size), dtype=jnp.float32)
    cell = jax.random.normal(kc, (1, batch, hidden_size), dtype=jnp.float32)

    # Deterministic synthetic parameters (weights pre-transposed: y = x @ W + b).
    wi = 0.1 * jax.random.normal(kwi, (input_size, 4 * hidden_size), dtype=jnp.float32)
    bi = 0.1 * jax.random.normal(kbi, (4 * hidden_size,), dtype=jnp.float32)
    wh = 0.1 * jax.random.normal(kwh, (hidden_size, 4 * hidden_size), dtype=jnp.float32)
    bh = 0.1 * jax.random.normal(kbh, (4 * hidden_size,), dtype=jnp.float32)

    # hidden is a nested tuple; forward only uses hidden[1] = (hid, cell).
    hidden = (None, (hid, cell))

    # --- single-step cell (module semantics) ---
    h_t, (h_t2, c_t), f_t, i_t = lstm_cell_forward(x, hidden, wi, bi, wh, bh)
    jax.block_until_ready((h_t, c_t, f_t, i_t))

    rh, rc, rf, ri = _reference_step(
        x, hid.reshape(batch, hidden_size), cell.reshape(batch, hidden_size),
        wi, bi, wh, bh)
    assert jnp.allclose(h_t, rh.reshape(1, batch, hidden_size), atol=1e-4), "h_t mismatch"
    assert jnp.allclose(c_t, rc.reshape(1, batch, hidden_size), atol=1e-4), "c_t mismatch"
    assert jnp.allclose(f_t, rf, atol=1e-4), "f_t mismatch"
    assert jnp.allclose(i_t, ri, atol=1e-4), "i_t mismatch"

    # --- sequence variant (whole timestep loop inside one kernel) ---
    h_seq, c_seq, f_seq, i_seq = lstm_sequence_forward(xs, hidden, wi, bi, wh, bh)
    jax.block_until_ready((h_seq, c_seq, f_seq, i_seq))

    rhs, rcs, rfs, ris = _reference_sequence(
        xs, hid.reshape(batch, hidden_size), cell.reshape(batch, hidden_size),
        wi, bi, wh, bh)
    assert jnp.allclose(h_seq, rhs, atol=1e-4), "h_seq mismatch"
    assert jnp.allclose(c_seq, rcs, atol=1e-4), "c_seq mismatch"
    assert jnp.allclose(f_seq, rfs, atol=1e-4), "f_seq mismatch"
    assert jnp.allclose(i_seq, ris, atol=1e-4), "i_seq mismatch"

    print("KERNEL_OK")
</pallas_src>

<mosaic_0001>
module attributes {stable_mosaic.version = 11 : i64} {
  func.func @_lstm_cell_kernel(%arg0: memref<8x48xf32, #tpu.memory_space<vmem>>, %arg1: memref<8x32xf32, #tpu.memory_space<vmem>>, %arg2: memref<48x128xf32, #tpu.memory_space<vmem>>, %arg3: memref<1x128xf32, #tpu.memory_space<vmem>>, %arg4: memref<8x128xf32, #tpu.memory_space<vmem>>) attributes {dimension_semantics = [], scalar_prefetch = 0 : i64, scratch_operands = 0 : i64, tpu.core_type = #tpu.core_type<tc>} {
    %c0 = arith.constant 0 : index
    %c0_0 = arith.constant 0 : index
    %0 = vector.load %arg0[%c0, %c0_0] : memref<8x48xf32, #tpu.memory_space<vmem>>, vector<8x48xf32>
    %c0_1 = arith.constant 0 : index
    %c0_2 = arith.constant 0 : index
    %1 = vector.load %arg2[%c0_1, %c0_2] : memref<48x128xf32, #tpu.memory_space<vmem>>, vector<48x128xf32>
    %cst = arith.constant dense<0.000000e+00> : vector<8x128xf32>
    %2 = tpu.matmul %0, %1, %cst {dimension_numbers = #tpu.dot_dimension_numbers<[1], [0], [0], [1], [0, 0, 1, 1], [], []>} : vector<8x48xf32>, vector<48x128xf32>, vector<8x128xf32> -> vector<8x128xf32>
    %c0_3 = arith.constant 0 : index
    %c0_4 = arith.constant 0 : index
    %3 = vector.load %arg3[%c0_3, %c0_4] : memref<1x128xf32, #tpu.memory_space<vmem>>, vector<1x128xf32>
    %4 = vector.broadcast %3 : vector<1x128xf32> to vector<8x128xf32>
    %5 = arith.addf %2, %4 : vector<8x128xf32>
    %6 = tpu.iota {dimensions = array<i32: 1>} : vector<8x128xi32>
    %c96_i32 = arith.constant 96 : i32
    %7 = vector.broadcast %c96_i32 : i32 to vector<8x128xi32>
    %8 = arith.cmpi slt, %6, %7 : vector<8x128xi32>
    %cst_5 = arith.constant 5.000000e-01 : f32
    %9 = vector.broadcast %cst_5 : f32 to vector<8x128xf32>
    %10 = arith.mulf %9, %5 : vector<8x128xf32>
    %11 = arith.select %8, %10, %5 : vector<8x128xi1>, vector<8x128xf32>
    %12 = math.tanh %11 : vector<8x128xf32>
    %cst_6 = arith.constant 1.000000e+00 : f32
    %13 = vector.broadcast %cst_6 : f32 to vector<8x128xf32>
    %14 = arith.addf %12, %13 : vector<8x128xf32>
    %cst_7 = arith.constant 5.000000e-01 : f32
    %15 = vector.broadcast %cst_7 : f32 to vector<8x128xf32>
    %16 = arith.mulf %15, %14 : vector<8x128xf32>
    %17 = arith.select %8, %16, %12 : vector<8x128xi1>, vector<8x128xf32>
    %18 = vector.extract_strided_slice %17 {offsets = [0, 0], sizes = [8, 32], strides = [1, 1]} : vector<8x128xf32> to vector<8x32xf32>
    %19 = vector.extract_strided_slice %17 {offsets = [0, 32], sizes = [8, 32], strides = [1, 1]} : vector<8x128xf32> to vector<8x32xf32>
    %20 = vector.extract_strided_slice %17 {offsets = [0, 64], sizes = [8, 32], strides = [1, 1]} : vector<8x128xf32> to vector<8x32xf32>
    %21 = vector.extract_strided_slice %17 {offsets = [0, 96], sizes = [8, 32], strides = [1, 1]} : vector<8x128xf32> to vector<8x32xf32>
    %c0_8 = arith.constant 0 : index
    %c0_9 = arith.constant 0 : index
    %22 = vector.load %arg1[%c0_8, %c0_9] : memref<8x32xf32, #tpu.memory_space<vmem>>, vector<8x32xf32>
    %23 = arith.mulf %22, %19 : vector<8x32xf32>
    %24 = arith.mulf %18, %21 : vector<8x32xf32>
    %25 = arith.addf %23, %24 : vector<8x32xf32>
    %26 = math.tanh %25 : vector<8x32xf32>
    %27 = arith.mulf %20, %26 : vector<8x32xf32>
    %28 = vector.extract_strided_slice %17 {offsets = [0, 0], sizes = [8, 64], strides = [1, 1]} : vector<8x128xf32> to vector<8x64xf32>
    %29 = tpu.concatenate %28, %27, %25 in 1 : vector<8x64xf32>, vector<8x32xf32>, vector<8x32xf32> -> vector<8x128xf32>
    %c0_10 = arith.constant 0 : index
    %c0_11 = arith.constant 0 : index
    %30 = vector.load %arg4[%c0_10, %c0_11] : memref<8x128xf32, #tpu.memory_space<vmem>>, vector<8x128xf32>
    tpu.vector_store %arg4[%c0_10, %c0_11], %29 {strides = array<i32>} : memref<8x128xf32, #tpu.memory_space<vmem>>, vector<8x128xf32>,
    return
  }
}

</mosaic_0001>

<llo_original>
// kernel: tpu_custom_call.1
$region0: #{tpu_custom_call.1}
  #allocation0 [shape = 'u32[]', space=smem, size = 0x4, offset = 0x4, fixed_abs, tag = 'smem constant byte address 0x4 - core index']
  #allocation1 [shape = 'u32[144,128]{1,0:T(1,128)}', space=vmem, size = 0x12000, scoped, tag = 'internal scratch']
  %s0 = inlined_call_operand.hbm [shape: f32[8,48], index: 0, kind: input, shape index: {}]
  %s1 = inlined_call_operand.hbm [shape: f32[8,32], index: 1, kind: input, shape index: {}]
  %s2 = inlined_call_operand.hbm [shape: f32[48,128], index: 2, kind: input, shape index: {}]
  %s3 = inlined_call_operand.vmem [shape: f32[1,128], index: 3, kind: input, shape index: {}]
  %s4 = inlined_call_operand.hbm [shape: f32[8,128], index: 4, kind: output, shape index: {}]
  %s5 = sld [smem:[#allocation0]]
  $region38: #{tpu_custom_call.1} parent=0
    _
  %s7 = ssub.s32 1, %s5
  %s8 = scalar_select 0, %s7, %s5
  $region1: #{tpu_custom_call.1} parent=0
    #allocation2 [shape = 'u8[4096]{0}', space=vmem, size = 0x1000, scoped, tag = 'input window, operand 0, single buffered']
    #allocation3 [shape = 's32[1]{0}', space=sflag, size = 0x4, scoped, tag = 'scoped memory for tpu_custom_call.1']
    #allocation4 [shape = 's32[1]{0}', space=sflag, size = 0x4, scoped, tag = 'scoped memory for tpu_custom_call.1']
    #allocation5 [shape = 'u8[4096]{0}', space=vmem, size = 0x1000, scoped, tag = 'input window, operand 1, single buffered']
    #allocation6 [shape = 's32[1]{0}', space=sflag, size = 0x4, scoped, tag = 'scoped memory for tpu_custom_call.1']
    #allocation7 [shape = 'u8[24576]{0}', space=vmem, size = 0x6000, scoped, tag = 'input window, operand 2, single buffered']
    #allocation8 [shape = 'u8[4096]{0}', space=vmem, size = 0x1000, scoped, tag = 'output window, operand 0, single buffered']
    %9 = vsyncpa [#allocation3], 0
    %10 = vsyncpa [#allocation6], 0
    %11 = vsyncpa [#allocation4], 0
    // Predicated region
    $region2: #{tpu_custom_call.1} parent=1 // pred_check
      _
    $region3: #{tpu_custom_call.1} parent=1 // pred_check_branch
      %13 = sbr.rel (0) target = $region5
    $region4: #{tpu_custom_call.1} parent=1 // pred_region
      %s15 = ssub.s32 128, 128
      %16 = vsyncadd [#allocation3], %s15
      %s18 = sshll.u32 [#allocation2], 4
      %s19 = int_to_ptr.vmem [resolvable:$true] %s18
      %21 = dma.hbm_to_vmem [thread:$0]  %s0, 128, %s19, [#allocation3]
    $region5: #{tpu_custom_call.1} parent=1 // pred_fallthru
      _
    // Predicated region
    $region6: #{tpu_custom_call.1} parent=1 // pred_check
      _
    $region7: #{tpu_custom_call.1} parent=1 // pred_check_branch
      %23 = sbr.rel (0) target = $region9
    $region8: #{tpu_custom_call.1} parent=1 // pred_region
      %s25 = ssub.s32 128, 128
      %26 = vsyncadd [#allocation6], %s25
      %s28 = sshll.u32 [#allocation5], 4
      %s29 = int_to_ptr.vmem [resolvable:$true] %s28
      %31 = dma.hbm_to_vmem [thread:$0]  %s1, 128, %s29, [#allocation6]
    $region9: #{tpu_custom_call.1} parent=1 // pred_fallthru
      _
    // Predicated region
    $region10: #{tpu_custom_call.1} parent=1 // pred_check
      _
    $region11: #{tpu_custom_call.1} parent=1 // pred_check_branch
      %33 = sbr.rel (0) target = $region13
    $region12: #{tpu_custom_call.1} parent=1 // pred_region
      %s35 = ssub.s32 768, 768
      %36 = vsyncadd [#allocation6], %s35
      %s37 = sshll.u32 [#allocation7], 4
      %s38 = int_to_ptr.vmem [resolvable:$true] %s37
      %43 = dma.hbm_to_vmem [thread:$0]  %s2, 768, %s38, [#allocation6], 128, 128, 8
    $region13: #{tpu_custom_call.1} parent=1 // pred_fallthru
      _
    // Predicated region
    $region14: #{tpu_custom_call.1} parent=1 // pred_check
      _
    $region15: #{tpu_custom_call.1} parent=1 // pred_check_branch
      %45 = sbr.rel (0) target = $region17
    $region16: #{tpu_custom_call.1} parent=1 // pred_region
      _
    $region17: #{tpu_custom_call.1} parent=1 // pred_fallthru
      _
    // Predicated region
    $region18: #{tpu_custom_call.1} parent=1 // pred_check
      _
    $region19: #{tpu_custom_call.1} parent=1 // pred_check_branch
      %47 = sbr.rel (0) target = $region21
    $region20: #{tpu_custom_call.1} parent=1 // pred_region
      %48 = dma.done [#allocation3], 128
    $region21: #{tpu_custom_call.1} parent=1 // pred_fallthru
      _
    // Predicated region
    $region22: #{tpu_custom_call.1} parent=1 // pred_check
      _
    $region23: #{tpu_custom_call.1} parent=1 // pred_check_branch
      %50 = sbr.rel (0) target = $region25
    $region24: #{tpu_custom_call.1} parent=1 // pred_region
      %51 = dma.done [#allocation6], 128
    $region25: #{tpu_custom_call.1} parent=1 // pred_fallthru
      _
    // Predicated region
    $region26: #{tpu_custom_call.1} parent=1 // pred_check
      _
    $region27: #{tpu_custom_call.1} parent=1 // pred_check_branch
      %53 = sbr.rel (0) target = $region29
    $region28: #{tpu_custom_call.1} parent=1 // pred_region
      %54 = dma.done [#allocation6], 768
    $region29: #{tpu_custom_call.1} parent=1 // pred_fallthru
      _
    %v55 = vld [vmem:[#allocation2] sm:$0xff]
    %v56 = vld [vmem:[#allocation7] sm:$0xff]
    %v57 = vld [vmem:[#allocation7 + $0x8] sm:$0xff]
    %v58 = vld [vmem:[#allocation7 + $0x10] sm:$0xff]
    %v59 = vld [vmem:[#allocation7 + $0x18] sm:$0xff]
    %v60 = vld [vmem:[#allocation7 + $0x20] sm:$0xff]
    %v61 = vld [vmem:[#allocation7 + $0x28] sm:$0xff]
    %v62 = vld [vmem:[%s3] sm:$0x1]
    %v64 = vlaneseq
    %v65 = vshrl.u32 %v64, 7
    %v66 = vsub.s32 0, %v65
    %v67 = vrot.slane %v62, %v66
    %vm69 = vcmask 392192
    %v71 = vsel %vm69, %v55, 0
    %73 = vmatprep.subr.mxu0 0.0
    %74 = vmatpush1.msra.mxu0 %v56
    %75 = vmatprep.subr.mxu0 0.0
    %76 = vmatpush1.msra.mxu0 %v57
    %77 = vmatprep.subr.mxu0 0.0
    %78 = vmatpush1.msra.mxu0 %v58
    %79 = vmatprep.subr.mxu0 0.0
    %80 = vmatpush1.msra.mxu0 %v59
    %81 = vmatprep.subr.mxu0 0.0
    %82 = vmatpush1.msra.mxu0 %v60
    %83 = vmatprep.subr.mxu0 0.0
    %84 = vmatpush1.msra.mxu0 %v61
    %85 = vmatprep.subr.mxu0 0.0
    %86 = vmatpush1.msra.mxu0 0.0
    %87 = vmatprep.subr.mxu0 0.0
    %88 = vmatpush1.msra.mxu0 0.0
    %89 = vmatprep.subr.mxu0 0.0
    %90 = vmatpush1.msra.mxu0 0.0
    %91 = vmatprep.subr.mxu0 0.0
    %92 = vmatpush1.msra.mxu0 0.0
    %93 = vmatprep.subr.mxu0 0.0
    %94 = vmatpush1.msra.mxu0 0.0
    %95 = vmatprep.subr.mxu0 0.0
    %96 = vmatpush1.msra.mxu0 0.0
    %97 = vmatprep.subr.mxu0 0.0
    %98 = vmatpush1.msra.mxu0 0.0
    %99 = vmatprep.subr.mxu0 0.0
    %100 = vmatpush1.msra.mxu0 0.0
    %101 = vmatprep.subr.mxu0 0.0
    %102 = vmatpush1.msra.mxu0 0.0
    %103 = vmatprep.subr.mxu0 0.0
    %104 = vmatpush1.msra.mxu0 0.0
    %105 = vmatprep.subr.mxu0 0.0
    %106 = vmatpush1.msra.mxu0 0.0
    %107 = vmatprep.subr.mxu0 0.0
    %108 = vmatpush1.msra.mxu0 0.0
    %109 = vmatprep.subr.mxu0 0.0
    %110 = vmatpush1.msra.mxu0 0.0
    %111 = vmatprep.subr.mxu0 0.0
    %112 = vmatpush1.msra.mxu0 0.0
    %113 = vmatprep.subr.mxu0 0.0
    %114 = vmatpush1.msra.mxu0 0.0
    %115 = vmatprep.subr.mxu0 0.0
    %116 = vmatpush1.msra.mxu0 0.0
    %117 = vmatprep.subr.mxu0 0.0
    %118 = vmatpush1.msra.mxu0 0.0
    %119 = vmatprep.subr.mxu0 0.0
    %120 = vmatpush1.msra.mxu0 0.0
    %121 = vmatprep.subr.mxu0 0.0
    %122 = vmatpush1.msra.mxu0 0.0
    %123 = vmatprep.subr.mxu0 0.0
    %124 = vmatpush1.msra.mxu0 0.0
    %125 = vmatprep.subr.mxu0 0.0
    %126 = vmatpush1.msra.mxu0 0.0
    %127 = vmatprep.subr.mxu0 0.0
    %128 = vmatpush1.msra.mxu0 0.0
    %129 = vmatprep.subr.mxu0 0.0
    %130 = vmatpush1.msra.mxu0 0.0
    %131 = vmatprep.subr.mxu0 0.0
    %132 = vmatpush1.msra.mxu0 0.0
    %133 = vmatprep.subr.mxu0 0.0
    %134 = vmatpush1.msra.mxu0 0.0
    %135 = vmatprep.subr.mxu0 0.0
    %136 = vmatpush1.msra.mxu0 0.0
    %137 = vmatprep.mubr.f32.mxu0 0.0
    %138 = vmatmul.mubr.f32.gmra.mrb[0].mxu0 %v71
    %v139 = vpop.f32.mrb[0].mxu0
    %v140 = vadd.f32 %v67, %v139
    %v141 = vpop.f32.mrb[0].mxu0
    %142 = vdwg.mxu0
    %v143 = vlaneseq
    %v144 = vand.u32 %v143, 127
    %vm145 = vcmp.lt.s32.totalorder %v144, 96
    %v146 = vmul.f32 %v140, 0.5
    %v147 = vsel %vm145, %v146, %v140
    %v148 = vtanh.pop %v147
    %v149 = vadd.f32 %v148, 1.0
    %v150 = vmul.f32 %v149, 0.5
    %v151 = vsel %vm145, %v150, %v148
    %v152 = vld [vmem:[#allocation5] sm:$0xff]
    %154 = vrot.lane.b32.xlu0 %v151, 96
    %v155 = vpop.permute.xlu0 %154
    %v157 = vmul.f32 %v152, %v155
    %158 = vrot.lane.b32.xlu0 %v151, 32
    %v159 = vpop.permute.xlu0 %158
    %v161 = vmul.f32 %v151, %v159
    %v162 = vadd.f32 %v157, %v161
    %v163 = vtanh.pop %v162
    %165 = vrot.lane.b32.xlu0 %v163, 64
    %v166 = vpop.permute.xlu0 %165
    %v168 = vmul.f32 %v151, %v166
    %170 = vrot.lane.b32.xlu0 %v162, 96
    %v171 = vpop.permute.xlu0 %170
    %vm173 = vcmask 523264
    %v174 = vsel %vm173, %v151, %v168
    %vm175 = vcmask 785408
    %v176 = vsel %vm175, %v174, %v171
    %177 = vst [vmem:[#allocation8] sm:$0xff] %v176
    // Predicated region
    $region30: #{tpu_custom_call.1} parent=1 // pred_check
      _
    $region31: #{tpu_custom_call.1} parent=1 // pred_check_branch
      %179 = sbr.rel (0) target = $region33
    $region32: #{tpu_custom_call.1} parent=1 // pred_region
      %s181 = ssub.s32 128, 128
      %182 = vsyncadd [#allocation4], %s181
      %s184 = sshll.u32 [#allocation8], 4
      %s185 = int_to_ptr.vmem [resolvable:$true] %s184
      %187 = dma.vmem_to_hbm [thread:$0]  %s185, 128, %s4, [#allocation4]
    $region33: #{tpu_custom_call.1} parent=1 // pred_fallthru
      _
    // Predicated region
    $region34: #{tpu_custom_call.1} parent=1 // pred_check
      _
    $region35: #{tpu_custom_call.1} parent=1 // pred_check_branch
      %189 = sbr.rel (0) target = $region37
    $region36: #{tpu_custom_call.1} parent=1 // pred_region
      %190 = dma.done [#allocation4], 128
    $region37: #{tpu_custom_call.1} parent=1 // pred_fallthru
      _
    %191 = vsyncpa [#allocation3], 1
    %192 = vsyncpa [#allocation6], 1
    %193 = vsyncpa [#allocation4], 1

</llo_original>
